<compile_context>
chip_gen: v7x
topology: tpu7x:2x2x1
jax: 0.10.0
libtpu: 0.0.40
codegen_flags: <defaults>
</compile_context>

<pallas_src>
import functools

import jax
import jax.numpy as jnp
from jax.experimental import pallas as pl
from jax.experimental.pallas import tpu as pltpu

_BN_EPS = 1e-5
_NEG_SLOPE = 0.1


def _round_up(x, m):
    return (x + m - 1) // m * m


def _conv_stats_kernel(p_ref, w_ref, y_ref, stats_ref):
    """Pass 1: conv-as-matmul (channels on sublanes) + per-tile BN partial sums.

    y(co, m) = W(co, ckk) @ patches(ckk, m); bf16 operands, f32 MXU accumulate.
    y is stored as bf16; the per-channel sum / sum-of-squares partials are computed
    from the f32 accumulator and packed into an (8, cout_pad) stats slab.
    """
    y = jnp.dot(w_ref[...], p_ref[0], preferred_element_type=jnp.float32)  # (Cp, tm) f32
    y_ref[0] = y.astype(y_ref.dtype)
    s = jnp.sum(y, axis=1)                      # (Cp,)  per-channel partial sum
    ss = jnp.sum(y * y, axis=1)                 # (Cp,)  per-channel partial sum of squares
    row = jax.lax.broadcasted_iota(jnp.int32, stats_ref.shape[2:], 0)      # (8, Cp)
    stats_ref[0, 0] = jnp.where(row == 0, s[None, :],
                                jnp.where(row == 1, ss[None, :], 0.0))


def _bn_lrelu_kernel(y_ref, scale_ref, shift_ref, o_ref):
    """Pass 2: folded BN affine (one FMA per element) + LeakyReLU(0.1)."""
    t = y_ref[0].astype(jnp.float32) * scale_ref[...] + shift_ref[...]
    o_ref[0] = jnp.where(t >= 0.0, t, _NEG_SLOPE * t)


@functools.partial(jax.jit, static_argnames=("kernel_size", "stride", "tm"))
def conv_forward(x, weight, bias, gamma, beta, *, kernel_size, stride, tm=512):
    """x: (N, Cin, H, W) f32. weight: (Cout, Cin, K, K). Returns (N, Cout, OH, OW) f32."""
    N, Cin, H, W = x.shape
    Cout = weight.shape[0]
    K = kernel_size
    S = stride
    p = (K - 1) // 2                                   # int(np.floor((k-1)/2))

    Hp, Wp = H + 2 * p, W + 2 * p
    OH = (Hp - K) // S + 1
    OW = (Wp - K) // S + 1
    m_per = OH * OW                                    # spatial (lane) extent per sample
    CKK = K * K * Cin                                  # matmul contraction dim

    cout_pad = _round_up(Cout, 8)                      # channels live on sublanes only
    ckk_pad = _round_up(CKK, 8)

    # ---- tile sizing -------------------------------------------------------------
    # Lane tile for pass 1.  Keep the double-buffered working set well under the 16 MiB
    # scoped-VMEM default of v5e (v6e/v7x have >= 32 MiB scoped), so no explicit
    # vmem_limit_bytes is needed on any generation.
    tm = _round_up(min(tm, _round_up(m_per, 128)), 128)

    def _p1_ws(t):
        return (2 * (t * ckk_pad * 2            # patches tile, bf16, double-buffered
                     + ckk_pad * cout_pad * 2   # weights, bf16, double-buffered
                     + t * cout_pad * 2)        # y tile, bf16, double-buffered
                + 2 * 8 * cout_pad * 4)         # stats slab

    while tm > 128 and _p1_ws(tm) > 12 * 1024 * 1024:
        tm -= 128

    m_pad = _round_up(m_per, tm)
    num_tiles = m_pad // tm
    # v7x has two TensorCores that split the "parallel" grid axes: make sure there are
    # at least two grid steps when the problem allows it.
    if N * num_tiles < 2 and m_pad % 256 == 0:
        tm = m_pad // 2
        num_tiles = 2

    # ---- glue: bf16 padded im2col, built in one shot from the NCHW input ----------
    # TODO(synk): replace with a halo-tiled in-kernel im2col (manual strip DMA +
    # K*K shifted matmuls) to avoid materialising the K^2-expanded patches in HBM.
    xb = x.astype(jnp.bfloat16)
    xp = jnp.pad(xb, ((0, 0), (0, 0), (p, p), (p, p)))
    cols = []
    for kh in range(K):
        for kw in range(K):
            cols.append(xp[:, :, kh:kh + (OH - 1) * S + 1:S,
                               kw:kw + (OW - 1) * S + 1:S])        # (N, Cin, OH, OW)
    if ckk_pad > CKK:
        cols.append(jnp.zeros((N, ckk_pad - CKK, OH, OW), jnp.bfloat16))
    patches = jnp.concatenate(cols, axis=1).reshape(N, ckk_pad, m_per)
    if m_pad > m_per:
        patches = jnp.concatenate(
            [patches, jnp.zeros((N, ckk_pad, m_pad - m_per), jnp.bfloat16)], axis=-1)

    # weight (Cout, Cin, K, K) -> (Cout, K, K, Cin) -> (Cout, CKK); matches the
    # (kh, kw, ci) ordering of the patch channel axis above.
    w_t = jnp.transpose(weight, (0, 2, 3, 1)).reshape(Cout, CKK)
    w_t = jnp.pad(w_t, ((0, cout_pad - Cout), (0, ckk_pad - CKK))).astype(jnp.bfloat16)

    # The Conv2d bias is intentionally unused: training-mode BatchNorm subtracts the
    # batch mean, which exactly cancels a per-channel constant added by the conv.
    del bias

    # ---- pass 1: tiled conv matmul + per-tile BN partial sums ----------------------
    y, stats = pl.pallas_call(
        _conv_stats_kernel,
        out_shape=(
            jax.ShapeDtypeStruct((N, cout_pad, m_pad), jnp.bfloat16),
            jax.ShapeDtypeStruct((N, num_tiles, 8, cout_pad), jnp.float32),
        ),
        grid=(N, num_tiles),
        in_specs=[
            pl.BlockSpec((1, ckk_pad, tm), lambda n, i: (n, 0, i)),
            pl.BlockSpec((cout_pad, ckk_pad), lambda n, i: (0, 0)),
        ],
        out_specs=(
            pl.BlockSpec((1, cout_pad, tm), lambda n, i: (n, 0, i)),
            pl.BlockSpec((1, 1, 8, cout_pad), lambda n, i: (n, i, 0, 0)),
        ),
        compiler_params=pltpu.CompilerParams(
            dimension_semantics=("parallel", "parallel")),
    )(patches, w_t)

    # ---- glue: combine partials -> global batch stats -> folded scale/shift --------
    # Zero-padded lanes/sublanes/contraction rows contribute exactly zero to the
    # partials; divide by the true element count N*OH*OW (biased variance, eps=1e-5).
    cnt = float(N * m_per)
    total = jnp.sum(stats, axis=(0, 1))                # (8, cout_pad); row0=sum, row1=sumsq
    mean = total[0] / cnt
    var = jnp.maximum(total[1] / cnt - mean * mean, 0.0)
    inv = jax.lax.rsqrt(var + _BN_EPS)
    gamma_p = jnp.pad(gamma, (0, cout_pad - Cout))
    beta_p = jnp.pad(beta, (0, cout_pad - Cout))
    scale = (gamma_p * inv).reshape(cout_pad, 1).astype(jnp.float32)
    shift = (beta_p - mean * gamma_p * inv).reshape(cout_pad, 1).astype(jnp.float32)

    # ---- pass 2: tiled normalize + LeakyReLU (bigger lane tile than pass 1) --------
    tm2 = tm

    def _p2_ws(t):
        return 2 * (t * cout_pad * 2 + t * cout_pad * 4) + 2 * cout_pad * 4 * 2

    while (m_pad % (tm2 * 2) == 0 and tm2 * 2 <= 4096
           and _p2_ws(tm2 * 2) <= 12 * 1024 * 1024
           and N * (m_pad // (tm2 * 2)) >= 2):
        tm2 *= 2
    num_tiles2 = m_pad // tm2

    out_full = pl.pallas_call(
        _bn_lrelu_kernel,
        out_shape=jax.ShapeDtypeStruct((N, cout_pad, m_pad), jnp.float32),
        grid=(N, num_tiles2),
        in_specs=[
            pl.BlockSpec((1, cout_pad, tm2), lambda n, i: (n, 0, i)),
            pl.BlockSpec((cout_pad, 1), lambda n, i: (0, 0)),
            pl.BlockSpec((cout_pad, 1), lambda n, i: (0, 0)),
        ],
        out_specs=pl.BlockSpec((1, cout_pad, tm2), lambda n, i: (n, 0, i)),
        compiler_params=pltpu.CompilerParams(
            dimension_semantics=("parallel", "parallel")),
    )(y, scale, shift)

    # ---- strip (usually zero) padding; layout is already NCHW -----------------------
    out = out_full[:, :Cout, :m_per].reshape(N, Cout, OH, OW)
    return out


if __name__ == "__main__":
    # Module config: conv(num_in_layers=4, num_out_layers=8, kernel_size=3, stride=1)
    num_in, num_out, ksize, stride = 4, 8, 3, 1
    N, H, W = 2, 16, 16

    key = jax.random.PRNGKey(0)
    kx, kw_key, kb = jax.random.split(key, 3)

    x = jax.random.normal(kx, (N, num_in, H, W), dtype=jnp.float32)
    weight = 0.1 * jax.random.normal(kw_key, (num_out, num_in, ksize, ksize), dtype=jnp.float32)
    bias = 0.1 * jax.random.normal(kb, (num_out,), dtype=jnp.float32)
    gamma = jnp.ones((num_out,), dtype=jnp.float32)   # BatchNorm2d default affine init
    beta = jnp.zeros((num_out,), dtype=jnp.float32)

    out = conv_forward(x, weight, bias, gamma, beta, kernel_size=ksize, stride=stride)
    out = jax.block_until_ready(out)
    assert out.shape == (N, num_out, H, W)
    assert bool(jnp.all(jnp.isfinite(out)))

    # f32 reference (pad + conv + train-mode BatchNorm + LeakyReLU); loose tolerance
    # because the Pallas path runs the matmul in bf16.
    def _reference(xr, wr, br, gr, btr):
        pr = (ksize - 1) // 2
        xpr = jnp.pad(xr, ((0, 0), (0, 0), (pr, pr), (pr, pr)))
        z = jax.lax.conv_general_dilated(xpr, wr, (stride, stride), "VALID",
                                         dimension_numbers=("NCHW", "OIHW", "NCHW"))
        z = z + br[None, :, None, None]
        mu = jnp.mean(z, axis=(0, 2, 3), keepdims=True)
        va = jnp.mean((z - mu) ** 2, axis=(0, 2, 3), keepdims=True)
        zn = (z - mu) * jax.lax.rsqrt(va + _BN_EPS)
        zn = zn * gr[None, :, None, None] + btr[None, :, None, None]
        return jnp.where(zn >= 0, zn, _NEG_SLOPE * zn)

    ref = _reference(x, weight, bias, gamma, beta)
    err = float(jnp.max(jnp.abs(out - ref)))
    assert err < 0.1, f"max abs err vs f32 reference too large: {err}"
    print("KERNEL_OK")
</pallas_src>

<mosaic_0001>
module attributes {stable_mosaic.version = 11 : i64} {
  func.func @_conv_stats_kernel(%arg0: i32, %arg1: i32, %arg2: memref<1x40x256xbf16, #tpu.memory_space<vmem>>, %arg3: memref<8x40xbf16, #tpu.memory_space<vmem>>, %arg4: memref<1x8x256xbf16, #tpu.memory_space<vmem>>, %arg5: memref<1x1x8x8xf32, #tpu.memory_space<vmem>>) attributes {dimension_semantics = [#tpu.dimension_semantics<parallel>, #tpu.dimension_semantics<parallel>], iteration_bounds = array<i64: 2, 1>, scalar_prefetch = 0 : i64, scratch_operands = 0 : i64, tpu.core_type = #tpu.core_type<tc>, window_params = [{transform_indices = @transform_0, window_bounds = array<i64: 1, 40, 256>}, {pipeline_mode = #tpu.pipeline_mode<synchronous>, transform_indices = @transform_1, window_bounds = array<i64: 8, 40>}, {transform_indices = @transform_2, window_bounds = array<i64: 1, 8, 256>}, {transform_indices = @transform_3, window_bounds = array<i64: 1, 1, 8, 8>}]} {
    %c0 = arith.constant 0 : index
    %c0_0 = arith.constant 0 : index
    %0 = vector.load %arg3[%c0, %c0_0] : memref<8x40xbf16, #tpu.memory_space<vmem>>, vector<8x40xbf16>
    %c0_1 = arith.constant 0 : index
    %c0_2 = arith.constant 0 : index
    %c0_3 = arith.constant 0 : index
    %1 = vector.load %arg2[%c0_1, %c0_2, %c0_3] : memref<1x40x256xbf16, #tpu.memory_space<vmem>>, vector<1x40x256xbf16>
    %2 = vector.shape_cast %1 : vector<1x40x256xbf16> to vector<40x256xbf16>
    %cst = arith.constant dense<0.000000e+00> : vector<8x256xf32>
    %3 = tpu.matmul %0, %2, %cst {dimension_numbers = #tpu.dot_dimension_numbers<[1], [0], [0], [1], [0, 0, 1, 1], [], []>} : vector<8x40xbf16>, vector<40x256xbf16>, vector<8x256xf32> -> vector<8x256xf32>
    %4 = arith.truncf %3 : vector<8x256xf32> to vector<8x256xbf16>
    %c0_4 = arith.constant 0 : index
    %c0_5 = arith.constant 0 : index
    %c0_6 = arith.constant 0 : index
    %5 = vector.load %arg4[%c0_4, %c0_5, %c0_6] : memref<1x8x256xbf16, #tpu.memory_space<vmem>>, vector<1x8x256xbf16>
    %6 = vector.shape_cast %5 : vector<1x8x256xbf16> to vector<8x256xbf16>
    %7 = vector.shape_cast %4 : vector<8x256xbf16> to vector<1x8x256xbf16>
    tpu.vector_store %arg4[%c0_4, %c0_5, %c0_6], %7 {strides = array<i32>} : memref<1x8x256xbf16, #tpu.memory_space<vmem>>, vector<1x8x256xbf16>,
    %cst_7 = arith.constant dense<0.000000e+00> : vector<8xf32>
    %8 = vector.multi_reduction <add>, %3, %cst_7 [1] : vector<8x256xf32> to vector<8xf32>
    %9 = arith.mulf %3, %3 : vector<8x256xf32>
    %cst_8 = arith.constant dense<0.000000e+00> : vector<8xf32>
    %10 = vector.multi_reduction <add>, %9, %cst_8 [1] : vector<8x256xf32> to vector<8xf32>
    %11 = tpu.iota {dimensions = array<i32: 0>} : vector<8x8xi32>
    %c0_i32 = arith.constant 0 : i32
    %12 = vector.broadcast %c0_i32 : i32 to vector<8x8xi32>
    %13 = arith.cmpi eq, %11, %12 : vector<8x8xi32>
    %14 = vector.shape_cast %8 : vector<8xf32> to vector<1x8xf32>
    %c1_i32 = arith.constant 1 : i32
    %15 = vector.broadcast %c1_i32 : i32 to vector<8x8xi32>
    %16 = arith.cmpi eq, %11, %15 : vector<8x8xi32>
    %17 = vector.shape_cast %10 : vector<8xf32> to vector<1x8xf32>
    %cst_9 = arith.constant 0.000000e+00 : f32
    %18 = vector.shape_cast %17 : vector<1x8xf32> to vector<1x8xf32>
    %19 = vector.broadcast %18 : vector<1x8xf32> to vector<8x8xf32>
    %20 = vector.broadcast %cst_9 : f32 to vector<8x8xf32>
    %21 = arith.select %16, %19, %20 : vector<8x8xi1>, vector<8x8xf32>
    %22 = vector.shape_cast %14 : vector<1x8xf32> to vector<1x8xf32>
    %23 = vector.broadcast %22 : vector<1x8xf32> to vector<8x8xf32>
    %24 = arith.select %13, %23, %21 : vector<8x8xi1>, vector<8x8xf32>
    %c0_10 = arith.constant 0 : index
    %c0_11 = arith.constant 0 : index
    %c0_12 = arith.constant 0 : index
    %c0_13 = arith.constant 0 : index
    %25 = vector.load %arg5[%c0_10, %c0_11, %c0_12, %c0_13] : memref<1x1x8x8xf32, #tpu.memory_space<vmem>>, vector<1x1x8x8xf32>
    %26 = vector.shape_cast %25 : vector<1x1x8x8xf32> to vector<8x8xf32>
    %27 = vector.shape_cast %24 : vector<8x8xf32> to vector<1x1x8x8xf32>
    tpu.vector_store %arg5[%c0_10, %c0_11, %c0_12, %c0_13], %27 {strides = array<i32>} : memref<1x1x8x8xf32, #tpu.memory_space<vmem>>, vector<1x1x8x8xf32>,
    return
  }
  func.func @transform_0(%arg0: i32, %arg1: i32) -> (i32, i32, i32) {
    %c0_i32 = arith.constant 0 : i32
    %c0_i32_0 = arith.constant 0 : i32
    return %arg0, %c0_i32, %arg1 : i32, i32, i32
  }
  func.func @transform_1(%arg0: i32, %arg1: i32) -> (i32, i32) {
    %c0_i32 = arith.constant 0 : i32
    %c0_i32_0 = arith.constant 0 : i32
    %c0_i32_1 = arith.constant 0 : i32
    return %c0_i32, %c0_i32_0 : i32, i32
  }
  func.func @transform_2(%arg0: i32, %arg1: i32) -> (i32, i32, i32) {
    %c0_i32 = arith.constant 0 : i32
    %c0_i32_0 = arith.constant 0 : i32
    return %arg0, %c0_i32, %arg1 : i32, i32, i32
  }
  func.func @transform_3(%arg0: i32, %arg1: i32) -> (i32, i32, i32, i32) {
    %c0_i32 = arith.constant 0 : i32
    %c0_i32_0 = arith.constant 0 : i32
    %c0_i32_1 = arith.constant 0 : i32
    return %arg0, %arg1, %c0_i32, %c0_i32_0 : i32, i32, i32, i32
  }
}

module attributes {stable_mosaic.version = 11 : i64} {
  func.func @_bn_lrelu_kernel(%arg0: i32, %arg1: i32, %arg2: memref<1x8x256xbf16, #tpu.memory_space<vmem>>, %arg3: memref<8x1xf32, #tpu.memory_space<vmem>>, %arg4: memref<8x1xf32, #tpu.memory_space<vmem>>, %arg5: memref<1x8x256xf32, #tpu.memory_space<vmem>>) attributes {dimension_semantics = [#tpu.dimension_semantics<parallel>, #tpu.dimension_semantics<parallel>], iteration_bounds = array<i64: 2, 1>, scalar_prefetch = 0 : i64, scratch_operands = 0 : i64, tpu.core_type = #tpu.core_type<tc>, window_params = [{transform_indices = @transform_0, window_bounds = array<i64: 1, 8, 256>}, {pipeline_mode = #tpu.pipeline_mode<synchronous>, transform_indices = @transform_1, window_bounds = array<i64: 8, 1>}, {pipeline_mode = #tpu.pipeline_mode<synchronous>, transform_indices = @transform_2, window_bounds = array<i64: 8, 1>}, {transform_indices = @transform_3, window_bounds = array<i64: 1, 8, 256>}]} {
    %c0 = arith.constant 0 : index
    %c0_0 = arith.constant 0 : index
    %c0_1 = arith.constant 0 : index
    %0 = vector.load %arg2[%c0, %c0_0, %c0_1] : memref<1x8x256xbf16, #tpu.memory_space<vmem>>, vector<1x8x256xbf16>
    %1 = vector.shape_cast %0 : vector<1x8x256xbf16> to vector<8x256xbf16>
    %2 = arith.extf %1 : vector<8x256xbf16> to vector<8x256xf32>
    %c0_2 = arith.constant 0 : index
    %c0_3 = arith.constant 0 : index
    %3 = vector.load %arg3[%c0_2, %c0_3] : memref<8x1xf32, #tpu.memory_space<vmem>>, vector<8x1xf32>
    %4 = vector.broadcast %3 : vector<8x1xf32> to vector<8x256xf32>
    %5 = arith.mulf %2, %4 : vector<8x256xf32>
    %c0_4 = arith.constant 0 : index
    %c0_5 = arith.constant 0 : index
    %6 = vector.load %arg4[%c0_4, %c0_5] : memref<8x1xf32, #tpu.memory_space<vmem>>, vector<8x1xf32>
    %7 = vector.broadcast %6 : vector<8x1xf32> to vector<8x256xf32>
    %8 = arith.addf %5, %7 : vector<8x256xf32>
    %cst = arith.constant 0.000000e+00 : f32
    %9 = vector.broadcast %cst : f32 to vector<8x256xf32>
    %10 = arith.cmpf oge, %8, %9 : vector<8x256xf32>
    %cst_6 = arith.constant 1.000000e-01 : f32
    %11 = vector.broadcast %cst_6 : f32 to vector<8x256xf32>
    %12 = arith.mulf %11, %8 : vector<8x256xf32>
    %13 = arith.select %10, %8, %12 : vector<8x256xi1>, vector<8x256xf32>
    %c0_7 = arith.constant 0 : index
    %c0_8 = arith.constant 0 : index
    %c0_9 = arith.constant 0 : index
    %14 = vector.load %arg5[%c0_7, %c0_8, %c0_9] : memref<1x8x256xf32, #tpu.memory_space<vmem>>, vector<1x8x256xf32>
    %15 = vector.shape_cast %14 : vector<1x8x256xf32> to vector<8x256xf32>
    %16 = vector.shape_cast %13 : vector<8x256xf32> to vector<1x8x256xf32>
    tpu.vector_store %arg5[%c0_7, %c0_8, %c0_9], %16 {strides = array<i32>} : memref<1x8x256xf32, #tpu.memory_space<vmem>>, vector<1x8x256xf32>,
    return
  }
  func.func @transform_0(%arg0: i32, %arg1: i32) -> (i32, i32, i32) {
    %c0_i32 = arith.constant 0 : i32
    %c0_i32_0 = arith.constant 0 : i32
    return %arg0, %c0_i32, %arg1 : i32, i32, i32
  }
  func.func @transform_1(%arg0: i32, %arg1: i32) -> (i32, i32) {
    %c0_i32 = arith.constant 0 : i32
    %c0_i32_0 = arith.constant 0 : i32
    %c0_i32_1 = arith.constant 0 : i32
    return %c0_i32, %c0_i32_0 : i32, i32
  }
  func.func @transform_2(%arg0: i32, %arg1: i32) -> (i32, i32) {
    %c0_i32 = arith.constant 0 : i32
    %c0_i32_0 = arith.constant 0 : i32
    %c0_i32_1 = arith.constant 0 : i32
    return %c0_i32, %c0_i32_0 : i32, i32
  }
  func.func @transform_3(%arg0: i32, %arg1: i32) -> (i32, i32, i32) {
    %c0_i32 = arith.constant 0 : i32
    %c0_i32_0 = arith.constant 0 : i32
    return %arg0, %c0_i32, %arg1 : i32, i32, i32
  }
}

</mosaic_0001>

<llo_original>
// kernel: conv_forward.3
$region0: #{conv_forward.3}
  #allocation0 [shape = 'u32[]', space=smem, size = 0x4, offset = 0x4, fixed_abs, tag = 'smem constant byte address 0x4 - core index']
  #allocation1 [shape = 'u32[144,128]{1,0:T(1,128)}', space=vmem, size = 0x12000, scoped, tag = 'internal scratch']
  %s0 = inlined_call_operand.vmem [shape: bf16[2,8,256], index: 0, kind: input, shape index: {}]
  %s1 = inlined_call_operand.vmem [shape: f32[8,1], index: 1, kind: input, shape index: {}]
  %s2 = inlined_call_operand.vmem [shape: f32[8,1], index: 2, kind: input, shape index: {}]
  %s3 = inlined_call_operand.vmem [shape: f32[2,8,256], index: 3, kind: output, shape index: {}]
  %s4 = sld [smem:[#allocation0]]
  $region45: #{conv_forward.3} parent=0
    _
  %s6 = ssub.s32 1, %s4
  %s7 = scalar_select 0, %s6, %s4
  loop: start=0, step=1, limit=4
  $region2: #{conv_forward.3} parent=0 // loop_pre_header
    _
  $region3: #{conv_forward.3} parent=0 // loop_header
    %s9 = sphi 0, %s13
    %p10 = scmp.ge.s32.totalorder %s9, 4
    %s16 = sphi 0, %s28
    %s17 = sphi 0, %s24
    %s18 = sphi 0, %s16
    %s19 = sphi 0, %s17
    %s20 = sphi 0, %s18
    %s21 = sphi 0, %s19
    %s33 = sphi 0, %s35
    %s36 = sphi 0, %s33
    %s37 = sphi 0, %s36
    %s53 = sphi 0, %s37
    %s57 = sphi 0, %s57
    %s59 = sphi 0, %s57
    %s60 = sphi 0, %s59
    %s74 = sphi 0, %s60
    %s78 = sphi 0, %s78
    %s80 = sphi 0, %s78
    %s81 = sphi 0, %s80
    %s95 = sphi 0, %s81
    %s103 = sphi 0, %s105
    %s106 = sphi 0, %s103
    %s107 = sphi 0, %s106
    %s123 = sphi 0, %s107
  $region4: #{conv_forward.3} parent=0 // loop_header_branch
    %12 = sbr.rel (%p10) target = $region8
  $region5: #{conv_forward.3} parent=0 // loop_body
    %s14 = ssub.s32 %s9, 1
    %s15 = ssub.s32 %s9, 2
    %s22 = sadd.s32 1, %s17
    %p23 = scmp.ge.s32.totalorder %s22, 1
    %s24 = scalar_select %p23, 0, %s22
    %s25 = sadd.s32 1, %s16
    %s26 = scalar_select %p23, %s25, %s16
    %p27 = scmp.ge.s32.totalorder %s26, 2
    %s28 = scalar_select %p27, 0, %s26
    %s29 = ssub.s32 %s16, %s28
    %s30 = ssub.s32 %s17, %s24
    %s31 = sor.u32 %s29, %s30
    %p32 = scmp.eq.s32.totalorder %s31, 0
    %s34 = sadd.s32 %s33, 1
    %s35 = scalar_select %p32, %s33, %s34
    %p38 = pneg %p32
    %p39 = scmp.eq.s32.totalorder %s9, 1
    %p40 = por %p38, %p39
    %p41 = scmp.ne.s32.totalorder %s33, %s36
    %p42 = scmp.eq.s32.totalorder %s9, 0
    %p43 = por %p41, %p42
    %p44 = scmp.ne.s32.totalorder %s33, %s36
    %p45 = scmp.eq.s32.totalorder %s14, 1
    %p46 = por %p44, %p45
    %p47 = scmp.ne.s32.totalorder %s36, %s37
    %p48 = scmp.eq.s32.totalorder %s14, 0
    %p49 = por %p47, %p48
    %p50 = scmp.ne.s32.totalorder %s36, %s37
    %p51 = scmp.eq.s32.totalorder %s15, 1
    %p52 = por %p50, %p51
    %p54 = scmp.ne.s32.totalorder %s37, %s53
    %p55 = scmp.eq.s32.totalorder %s15, 0
    %p56 = por %p54, %p55
    %s58 = sadd.s32 %s57, 1
    %p61 = scmp.eq.s32.totalorder %s9, 1
    %p62 = scmp.ne.s32.totalorder %s57, %s59
    %p63 = scmp.eq.s32.totalorder %s9, 0
    %p64 = por %p62, %p63
    %p65 = scmp.ne.s32.totalorder %s57, %s59
    %p66 = scmp.eq.s32.totalorder %s14, 1
    %p67 = por %p65, %p66
    %p68 = scmp.ne.s32.totalorder %s59, %s60
    %p69 = scmp.eq.s32.totalorder %s14, 0
    %p70 = por %p68, %p69
    %p71 = scmp.ne.s32.totalorder %s59, %s60
    %p72 = scmp.eq.s32.totalorder %s15, 1
    %p73 = por %p71, %p72
    %p75 = scmp.ne.s32.totalorder %s60, %s74
    %p76 = scmp.eq.s32.totalorder %s15, 0
    %p77 = por %p75, %p76
    %s79 = sadd.s32 %s78, 1
    %p82 = scmp.eq.s32.totalorder %s9, 1
    %p83 = scmp.ne.s32.totalorder %s78, %s80
    %p84 = scmp.eq.s32.totalorder %s9, 0
    %p85 = por %p83, %p84
    %p86 = scmp.ne.s32.totalorder %s78, %s80
    %p87 = scmp.eq.s32.totalorder %s14, 1
    %p88 = por %p86, %p87
    %p89 = scmp.ne.s32.totalorder %s80, %s81
    %p90 = scmp.eq.s32.totalorder %s14, 0
    %p91 = por %p89, %p90
    %p92 = scmp.ne.s32.totalorder %s80, %s81
    %p93 = scmp.eq.s32.totalorder %s15, 1
    %p94 = por %p92, %p93
    %p96 = scmp.ne.s32.totalorder %s81, %s95
    %p97 = scmp.eq.s32.totalorder %s15, 0
    %p98 = por %p96, %p97
    %s99 = ssub.s32 %s16, %s28
    %s100 = ssub.s32 %s17, %s24
    %s101 = sor.u32 %s99, %s100
    %p102 = scmp.eq.s32.totalorder %s101, 0
    %s104 = sadd.s32 %s103, 1
    %s105 = scalar_select %p102, %s103, %s104
    %p108 = pneg %p102
    %p109 = scmp.eq.s32.totalorder %s9, 1
    %p110 = por %p108, %p109
    %p111 = scmp.ne.s32.totalorder %s103, %s106
    %p112 = scmp.eq.s32.totalorder %s9, 0
    %p113 = por %p111, %p112
    %p114 = scmp.ne.s32.totalorder %s103, %s106
    %p115 = scmp.eq.s32.totalorder %s14, 1
    %p116 = por %p114, %p115
    %p117 = scmp.ne.s32.totalorder %s106, %s107
    %p118 = scmp.eq.s32.totalorder %s14, 0
    %p119 = por %p117, %p118
    %p120 = scmp.ne.s32.totalorder %s106, %s107
    %p121 = scmp.eq.s32.totalorder %s15, 1
    %p122 = por %p120, %p121
    %p124 = scmp.ne.s32.totalorder %s107, %s123
    %p125 = scmp.eq.s32.totalorder %s15, 0
    %p126 = por %p124, %p125
    %p127 = scmp.le.s32.totalorder 1, %s9
    %p128 = scmp.lt.s32.totalorder %s9, 3
    %p129 = pnand %p127, %p128
    %p130 = pneg %p129
    // Predicated region
    $region9: #{conv_forward.3} parent=5 // pred_check
      _
    $region10: #{conv_forward.3} parent=5 // pred_check_branch
      %132 = sbr.rel (%p129) target = $region12
    $region11: #{conv_forward.3} parent=5 // pred_region
      %s133 = ssub.s32 %s9, 1
      // Predicated region
      $region13: #{conv_forward.3} parent=11 // pred_check
        %p134 = pneg %p70
      $region14: #{conv_forward.3} parent=11 // pred_check_branch
        %136 = sbr.rel (%p134) target = $region16
      $region15: #{conv_forward.3} parent=11 // pred_region
        _
      $region16: #{conv_forward.3} parent=11 // pred_fallthru
        _
      // Predicated region
      $region17: #{conv_forward.3} parent=11 // pred_check
        %p137 = pneg %p91
      $region18: #{conv_forward.3} parent=11 // pred_check_branch
        %139 = sbr.rel (%p137) target = $region20
      $region19: #{conv_forward.3} parent=11 // pred_region
        _
      $region20: #{conv_forward.3} parent=11 // pred_fallthru
        _
    $region12: #{conv_forward.3} parent=5 // pred_fallthru
      _
    %p140 = scmp.lt.s32.totalorder %s9, 2
    // Predicated region
    $region21: #{conv_forward.3} parent=5 // pred_check
      %p141 = pneg %p140
    $region22: #{conv_forward.3} parent=5 // pred_check_branch
      %143 = sbr.rel (%p141) target = $region24
    $region23: #{conv_forward.3} parent=5 // pred_region
      // Predicated region
      $region25: #{conv_forward.3} parent=23 // pred_check
        %p144 = pneg %p43
      $region26: #{conv_forward.3} parent=23 // pred_check_branch
        %146 = sbr.rel (%p144) target = $region28
      $region27: #{conv_forward.3} parent=23 // pred_region
        %s147 = smul.u32 2, %s17
        %p148 = scmp.lt.s32.totalorder %s16, 1
        %s149 = scalar_select %p148, %s16, 1
        %p150 = scmp.lt.s32.totalorder %s147, 1
        %s151 = scalar_select %p150, %s147, 1
        %s152 = smul.addr %s149, 2
        %s153 = sadd.s32 %s151, %s152
        %s154 = smul.addr %s153, 4
        %s155 = scalar_lea.vmem %s0, %s154
        %s156 = smul.u32 2, %s17
      $region28: #{conv_forward.3} parent=23 // pred_fallthru
        _
    $region24: #{conv_forward.3} parent=5 // pred_fallthru
      _
    %p157 = scmp.le.s32.totalorder 1, %s9
    %p158 = scmp.lt.s32.totalorder %s9, 3
    %p159 = pnand %p157, %p158
    %p160 = pneg %p159
    // Predicated region
    $region29: #{conv_forward.3} parent=5 // pred_check
      _
    $region30: #{conv_forward.3} parent=5 // pred_check_branch
      %162 = sbr.rel (%p159) target = $region32
    $region31: #{conv_forward.3} parent=5 // pred_region
      %s163 = ssub.s32 %s9, 1
      %s164 = smul.u32 2, %s19
      %p165 = scmp.lt.s32.totalorder %s18, 1
      %s166 = scalar_select %p165, %s18, 1
      %p167 = scmp.lt.s32.totalorder %s164, 1
      %s168 = scalar_select %p167, %s164, 1
      %s169 = smul.addr %s166, 2
      %s170 = sadd.s32 %s168, %s169
      %s171 = smul.addr %s170, 4
      %s172 = scalar_lea.vmem %s0, %s171
      %p173 = pneg %p49
      %p174 = pneg %p46
      %p175 = pneg %p70
      %p176 = pneg %p67
      %p177 = pneg %p91
      %p178 = pneg %p88
      %p179 = pneg %p119
      %p180 = pneg %p116
      %s181 = smul.u32 2, %s19
      %p182 = scmp.lt.s32.totalorder %s18, 1
      %s183 = scalar_select %p182, %s18, 1
      %p184 = scmp.lt.s32.totalorder %s181, 1
      %s185 = scalar_select %p184, %s181, 1
      %s186 = smul.addr %s183, 2
      %s187 = sadd.s32 %s185, %s186
      %s188 = smul.addr %s187, 8
      %s189 = scalar_lea.vmem %s3, %s188
      %s190 = smul.u32 2, %s19
      %p191 = scmp.lt.s32.totalorder %s18, 1
      %s192 = scalar_select %p191, %s18, 1
      %p193 = scmp.lt.s32.totalorder %s190, 1
      %s194 = scalar_select %p193, %s190, 1
      %s195 = smul.addr %s192, 2
      %s196 = sadd.s32 %s194, %s195
      %s197 = smul.addr %s196, 4
      %s198 = scalar_lea.vmem %s0, %s197
      %s199 = smul.u32 2, %s19
      %s200 = smul.u32 2, %s19
      %p201 = scmp.lt.s32.totalorder %s18, 1
      %s202 = scalar_select %p201, %s18, 1
      %p203 = scmp.lt.s32.totalorder %s200, 1
      %s204 = scalar_select %p203, %s200, 1
      %s205 = smul.addr %s202, 2
      %s206 = sadd.s32 %s204, %s205
      %s207 = smul.addr %s206, 8
      %s208 = scalar_lea.vmem %s3, %s207
      %s209 = smul.u32 2, %s19
      %v210 = vld [vmem:[%s198] sm:$0xff]
      %v211 = vunpack.c.l.bf16 %v210
      %v212 = vunpack.c.h.bf16 %v210
      %v213 = vld [vmem:[%s1] sm:$0xff]
      %215 = vset.pattern.permute.xlu0 0
      %216 = vperm.xlu0 %215, %v213
      %v217 = vpop.permute.xlu0 %216
      %v219 = vmul.f32 %v211, %v217
      %v220 = vmul.f32 %v212, %v217
      %v221 = vld [vmem:[%s2] sm:$0xff]
      %223 = vset.pattern.permute.xlu0 0
      %224 = vperm.xlu0 %223, %v221
      %v225 = vpop.permute.xlu0 %224
      %v227 = vadd.f32 %v219, %v225
      %v228 = vadd.f32 %v220, %v225
      %vm229 = vcmp.ge.f32.partialorder %v227, 0.0
      %vm230 = vcmp.ge.f32.partialorder %v228, 0.0
      %v231 = vmul.f32 %v227, 0.1
      %v232 = vmul.f32 %v228, 0.1
      %v233 = vsel %vm229, %v227, %v231
      %v234 = vsel %vm230, %v228, %v232
      %235 = vst [vmem:[%s208] sm:$0xff] %v233
      %236 = vst [vmem:[%s208 + $0x8] sm:$0xff] %v234
      %s237 = smul.u32 2, %s19
      %p238 = scmp.lt.s32.totalorder %s18, 1
      %s239 = scalar_select %p238, %s18, 1
      %p240 = scmp.lt.s32.totalorder %s237, 1
      %s241 = scalar_select %p240, %s237, 1
      %s242 = smul.addr %s239, 2
      %s243 = sadd.s32 %s241, %s242
      %s244 = smul.addr %s243, 8
      %s245 = scalar_lea.vmem %s3, %s244
      // Predicated region
      $region33: #{conv_forward.3} parent=31 // pred_check
        %p246 = pneg %p116
      $region34: #{conv_forward.3} parent=31 // pred_check_branch
        %248 = sbr.rel (%p246) target = $region36
      $region35: #{conv_forward.3} parent=31 // pred_region
        %s249 = smul.u32 2, %s19
      $region36: #{conv_forward.3} parent=31 // pred_fallthru
        _
    $region32: #{conv_forward.3} parent=5 // pred_fallthru
      _
    %p250 = scmp.le.s32.totalorder 2, %s9
    // Predicated region
    $region37: #{conv_forward.3} parent=5 // pred_check
      %p251 = pneg %p250
    $region38: #{conv_forward.3} parent=5 // pred_check_branch
      %253 = sbr.rel (%p251) target = $region40
    $region39: #{conv_forward.3} parent=5 // pred_region
      %s254 = ssub.s32 %s9, 2
      // Predicated region
      $region41: #{conv_forward.3} parent=39 // pred_check
        %p255 = pneg %p122
      $region42: #{conv_forward.3} parent=39 // pred_check_branch
        %257 = sbr.rel (%p255) target = $region44
      $region43: #{conv_forward.3} parent=39 // pred_region
        %s258 = smul.u32 2, %s21
        %p259 = scmp.lt.s32.totalorder %s20, 1
        %s260 = scalar_select %p259, %s20, 1
        %p261 = scmp.lt.s32.totalorder %s258, 1
        %s262 = scalar_select %p261, %s258, 1
        %s263 = smul.addr %s260, 2
        %s264 = sadd.s32 %s262, %s263
        %s265 = smul.addr %s264, 8
        %s266 = scalar_lea.vmem %s3, %s265
      $region44: #{conv_forward.3} parent=39 // pred_fallthru
        _
    $region40: #{conv_forward.3} parent=5 // pred_fallthru
      _
  $region6: #{conv_forward.3} parent=0 // loop_footer
    %s13 = sadd.s32 1, %s9
  $region7: #{conv_forward.3} parent=0 // loop_footer_branch
    %8 = sbr.rel target = $region3
  $region8: #{conv_forward.3} parent=0 // loop_exit
    _

// kernel: conv_forward.2
$region0: #{conv_forward.2}
  #allocation0 [shape = 'u32[]', space=smem, size = 0x4, offset = 0x4, fixed_abs, tag = 'smem constant byte address 0x4 - core index']
  #allocation1 [shape = 'u32[144,128]{1,0:T(1,128)}', space=vmem, size = 0x12000, scoped, tag = 'internal scratch']
  %s0 = inlined_call_operand.vmem [shape: bf16[2,40,256], index: 0, kind: input, shape index: {}]
  %s1 = inlined_call_operand.vmem [shape: bf16[8,40], index: 1, kind: input, shape index: {}]
  %s2 = inlined_call_operand.vmem [shape: bf16[2,8,256], index: 2, kind: output, shape index: {0}]
  %s3 = inlined_call_operand.vmem [shape: f32[2,1,8,8], index: 3, kind: output, shape index: {1}]
  %4 = xla_tuple %s2, %s3
  %s5 = sld [smem:[#allocation0]]
  $region49: #{conv_forward.2} parent=0
    _
  %s7 = ssub.s32 1, %s5
  %s8 = scalar_select 0, %s7, %s5
  loop: start=0, step=1, limit=4
  $region2: #{conv_forward.2} parent=0 // loop_pre_header
    _
  $region3: #{conv_forward.2} parent=0 // loop_header
    %s10 = sphi 0, %s14
    %p11 = scmp.ge.s32.totalorder %s10, 4
    %s17 = sphi 0, %s29
    %s18 = sphi 0, %s25
    %s19 = sphi 0, %s17
    %s20 = sphi 0, %s18
    %s21 = sphi 0, %s19
    %s22 = sphi 0, %s20
    %s34 = sphi 0, %s36
    %s37 = sphi 0, %s34
    %s38 = sphi 0, %s37
    %s54 = sphi 0, %s38
    %s58 = sphi 0, %s58
    %s60 = sphi 0, %s58
    %s61 = sphi 0, %s60
    %s75 = sphi 0, %s61
    %s83 = sphi 0, %s85
    %s86 = sphi 0, %s83
    %s87 = sphi 0, %s86
    %s103 = sphi 0, %s87
    %s111 = sphi 0, %s113
    %s114 = sphi 0, %s111
    %s115 = sphi 0, %s114
    %s131 = sphi 0, %s115
  $region4: #{conv_forward.2} parent=0 // loop_header_branch
    %13 = sbr.rel (%p11) target = $region8
  $region5: #{conv_forward.2} parent=0 // loop_body
    %s15 = ssub.s32 %s10, 1
    %s16 = ssub.s32 %s10, 2
    %s23 = sadd.s32 1, %s18
    %p24 = scmp.ge.s32.totalorder %s23, 1
    %s25 = scalar_select %p24, 0, %s23
    %s26 = sadd.s32 1, %s17
    %s27 = scalar_select %p24, %s26, %s17
    %p28 = scmp.ge.s32.totalorder %s27, 2
    %s29 = scalar_select %p28, 0, %s27
    %s30 = ssub.s32 %s17, %s29
    %s31 = ssub.s32 %s18, %s25
    %s32 = sor.u32 %s30, %s31
    %p33 = scmp.eq.s32.totalorder %s32, 0
    %s35 = sadd.s32 %s34, 1
    %s36 = scalar_select %p33, %s34, %s35
    %p39 = pneg %p33
    %p40 = scmp.eq.s32.totalorder %s10, 1
    %p41 = por %p39, %p40
    %p42 = scmp.ne.s32.totalorder %s34, %s37
    %p43 = scmp.eq.s32.totalorder %s10, 0
    %p44 = por %p42, %p43
    %p45 = scmp.ne.s32.totalorder %s34, %s37
    %p46 = scmp.eq.s32.totalorder %s15, 1
    %p47 = por %p45, %p46
    %p48 = scmp.ne.s32.totalorder %s37, %s38
    %p49 = scmp.eq.s32.totalorder %s15, 0
    %p50 = por %p48, %p49
    %p51 = scmp.ne.s32.totalorder %s37, %s38
    %p52 = scmp.eq.s32.totalorder %s16, 1
    %p53 = por %p51, %p52
    %p55 = scmp.ne.s32.totalorder %s38, %s54
    %p56 = scmp.eq.s32.totalorder %s16, 0
    %p57 = por %p55, %p56
    %s59 = sadd.s32 %s58, 1
    %p62 = scmp.eq.s32.totalorder %s10, 1
    %p63 = scmp.ne.s32.totalorder %s58, %s60
    %p64 = scmp.eq.s32.totalorder %s10, 0
    %p65 = por %p63, %p64
    %p66 = scmp.ne.s32.totalorder %s58, %s60
    %p67 = scmp.eq.s32.totalorder %s15, 1
    %p68 = por %p66, %p67
    %p69 = scmp.ne.s32.totalorder %s60, %s61
    %p70 = scmp.eq.s32.totalorder %s15, 0
    %p71 = por %p69, %p70
    %p72 = scmp.ne.s32.totalorder %s60, %s61
    %p73 = scmp.eq.s32.totalorder %s16, 1
    %p74 = por %p72, %p73
    %p76 = scmp.ne.s32.totalorder %s61, %s75
    %p77 = scmp.eq.s32.totalorder %s16, 0
    %p78 = por %p76, %p77
    %s79 = ssub.s32 %s17, %s29
    %s80 = ssub.s32 %s18, %s25
    %s81 = sor.u32 %s79, %s80
    %p82 = scmp.eq.s32.totalorder %s81, 0
    %s84 = sadd.s32 %s83, 1
    %s85 = scalar_select %p82, %s83, %s84
    %p88 = pneg %p82
    %p89 = scmp.eq.s32.totalorder %s10, 1
    %p90 = por %p88, %p89
    %p91 = scmp.ne.s32.totalorder %s83, %s86
    %p92 = scmp.eq.s32.totalorder %s10, 0
    %p93 = por %p91, %p92
    %p94 = scmp.ne.s32.totalorder %s83, %s86
    %p95 = scmp.eq.s32.totalorder %s15, 1
    %p96 = por %p94, %p95
    %p97 = scmp.ne.s32.totalorder %s86, %s87
    %p98 = scmp.eq.s32.totalorder %s15, 0
    %p99 = por %p97, %p98
    %p100 = scmp.ne.s32.totalorder %s86, %s87
    %p101 = scmp.eq.s32.totalorder %s16, 1
    %p102 = por %p100, %p101
    %p104 = scmp.ne.s32.totalorder %s87, %s103
    %p105 = scmp.eq.s32.totalorder %s16, 0
    %p106 = por %p104, %p105
    %s107 = ssub.s32 %s17, %s29
    %s108 = ssub.s32 %s18, %s25
    %s109 = sor.u32 %s107, %s108
    %p110 = scmp.eq.s32.totalorder %s109, 0
    %s112 = sadd.s32 %s111, 1
    %s113 = scalar_select %p110, %s111, %s112
    %p116 = pneg %p110
    %p117 = scmp.eq.s32.totalorder %s10, 1
    %p118 = por %p116, %p117
    %p119 = scmp.ne.s32.totalorder %s111, %s114
    %p120 = scmp.eq.s32.totalorder %s10, 0
    %p121 = por %p119, %p120
    %p122 = scmp.ne.s32.totalorder %s111, %s114
    %p123 = scmp.eq.s32.totalorder %s15, 1
    %p124 = por %p122, %p123
    %p125 = scmp.ne.s32.totalorder %s114, %s115
    %p126 = scmp.eq.s32.totalorder %s15, 0
    %p127 = por %p125, %p126
    %p128 = scmp.ne.s32.totalorder %s114, %s115
    %p129 = scmp.eq.s32.totalorder %s16, 1
    %p130 = por %p128, %p129
    %p132 = scmp.ne.s32.totalorder %s115, %s131
    %p133 = scmp.eq.s32.totalorder %s16, 0
    %p134 = por %p132, %p133
    %p135 = scmp.le.s32.totalorder 1, %s10
    %p136 = scmp.lt.s32.totalorder %s10, 3
    %p137 = pnand %p135, %p136
    %p138 = pneg %p137
    // Predicated region
    $region9: #{conv_forward.2} parent=5 // pred_check
      _
    $region10: #{conv_forward.2} parent=5 // pred_check_branch
      %140 = sbr.rel (%p137) target = $region12
    $region11: #{conv_forward.2} parent=5 // pred_region
      %s141 = ssub.s32 %s10, 1
      // Predicated region
      $region13: #{conv_forward.2} parent=11 // pred_check
        %p142 = pneg %p71
      $region14: #{conv_forward.2} parent=11 // pred_check_branch
        %144 = sbr.rel (%p142) target = $region16
      $region15: #{conv_forward.2} parent=11 // pred_region
        _
      $region16: #{conv_forward.2} parent=11 // pred_fallthru
        _
    $region12: #{conv_forward.2} parent=5 // pred_fallthru
      _
    %p145 = scmp.lt.s32.totalorder %s10, 2
    // Predicated region
    $region17: #{conv_forward.2} parent=5 // pred_check
      %p146 = pneg %p145
    $region18: #{conv_forward.2} parent=5 // pred_check_branch
      %148 = sbr.rel (%p146) target = $region20
    $region19: #{conv_forward.2} parent=5 // pred_region
      // Predicated region
      $region21: #{conv_forward.2} parent=19 // pred_check
        %p149 = pneg %p44
      $region22: #{conv_forward.2} parent=19 // pred_check_branch
        %151 = sbr.rel (%p149) target = $region24
      $region23: #{conv_forward.2} parent=19 // pred_region
        %s152 = smul.u32 2, %s18
        %p153 = scmp.lt.s32.totalorder %s17, 1
        %s154 = scalar_select %p153, %s17, 1
        %p155 = scmp.lt.s32.totalorder %s152, 1
        %s156 = scalar_select %p155, %s152, 1
        %s157 = smul.addr %s154, 10
        %s158 = sadd.s32 %s156, %s157
        %s159 = smul.addr %s158, 4
        %s160 = scalar_lea.vmem %s0, %s159
        %s161 = smul.u32 2, %s18
      $region24: #{conv_forward.2} parent=19 // pred_fallthru
        _
    $region20: #{conv_forward.2} parent=5 // pred_fallthru
      _
    %p162 = scmp.le.s32.totalorder 1, %s10
    %p163 = scmp.lt.s32.totalorder %s10, 3
    %p164 = pnand %p162, %p163
    %p165 = pneg %p164
    // Predicated region
    $region25: #{conv_forward.2} parent=5 // pred_check
      _
    $region26: #{conv_forward.2} parent=5 // pred_check_branch
      %167 = sbr.rel (%p164) target = $region28
    $region27: #{conv_forward.2} parent=5 // pred_region
      %s168 = ssub.s32 %s10, 1
      %s169 = smul.u32 2, %s20
      %p170 = scmp.lt.s32.totalorder %s19, 1
      %s171 = scalar_select %p170, %s19, 1
      %p172 = scmp.lt.s32.totalorder %s169, 1
      %s173 = scalar_select %p172, %s169, 1
      %s174 = smul.addr %s171, 10
      %s175 = sadd.s32 %s173, %s174
      %s176 = smul.addr %s175, 4
      %s177 = scalar_lea.vmem %s0, %s176
      %p178 = pneg %p50
      %p179 = pneg %p47
      %p180 = pneg %p71
      %p181 = pneg %p68
      %p182 = pneg %p99
      %p183 = pneg %p96
      %s184 = smul.u32 2, %s20
      %p185 = scmp.lt.s32.totalorder %s19, 1
      %s186 = scalar_select %p185, %s19, 1
      %p187 = scmp.lt.s32.totalorder %s184, 1
      %s188 = scalar_select %p187, %s184, 1
      %s189 = smul.addr %s186, 2
      %s190 = sadd.s32 %s188, %s189
      %s191 = smul.addr %s190, 4
      %s192 = scalar_lea.vmem %s2, %s191
      %p193 = pneg %p127
      %p194 = pneg %p124
      %p195 = scmp.lt.s32.totalorder %s19, 1
      %s196 = scalar_select %p195, %s19, 1
      %p197 = scmp.lt.s32.totalorder %s20, 0
      %s198 = scalar_select %p197, %s20, 0
      %s199 = sadd.s32 %s198, %s196
      %s200 = smul.addr %s199, 8
      %s201 = scalar_lea.vmem %s3, %s200
      %s202 = smul.u32 2, %s20
      %p203 = scmp.lt.s32.totalorder %s19, 1
      %s204 = scalar_select %p203, %s19, 1
      %p205 = scmp.lt.s32.totalorder %s202, 1
      %s206 = scalar_select %p205, %s202, 1
      %s207 = smul.addr %s204, 10
      %s208 = sadd.s32 %s206, %s207
      %s209 = smul.addr %s208, 4
      %s210 = scalar_lea.vmem %s0, %s209
      %s211 = smul.u32 2, %s20
      %s212 = smul.u32 2, %s20
      %p213 = scmp.lt.s32.totalorder %s19, 1
      %s214 = scalar_select %p213, %s19, 1
      %p215 = scmp.lt.s32.totalorder %s212, 1
      %s216 = scalar_select %p215, %s212, 1
      %s217 = smul.addr %s214, 2
      %s218 = sadd.s32 %s216, %s217
      %s219 = smul.addr %s218, 4
      %s220 = scalar_lea.vmem %s2, %s219
      %s221 = smul.u32 2, %s20
      %p222 = scmp.lt.s32.totalorder %s19, 1
      %s223 = scalar_select %p222, %s19, 1
      %p224 = scmp.lt.s32.totalorder %s20, 0
      %s225 = scalar_select %p224, %s20, 0
      %s226 = sadd.s32 %s225, %s223
      %s227 = smul.addr %s226, 8
      %s228 = scalar_lea.vmem %s3, %s227
      %v230 = vld [vmem:[%s1] sm:$0xf]
      %v231 = vld [vmem:[%s210] sm:$0xff]
      %v232 = vld [vmem:[%s210 + $0x8] sm:$0xff]
      %v233 = vld [vmem:[%s210 + $0x10] sm:$0xff]
      %v234 = vld [vmem:[%s210 + $0x18] sm:$0xff]
      %v235 = vld [vmem:[%s210 + $0x20] sm:$0xff]
      %v241 = vunpack.c.l.b16 %v231
      %v242 = vunpack.c.h.b16 %v231
      %v243 = vunpack.c.l.b16 %v232
      %v244 = vunpack.c.h.b16 %v232
      %v245 = vunpack.c.l.b16 %v233
      %v246 = vunpack.c.h.b16 %v233
      %v247 = vunpack.c.l.b16 %v234
      %v248 = vunpack.c.h.b16 %v234
      %v249 = vunpack.c.l.b16 %v235
      %v250 = vunpack.c.h.b16 %v235
      %v251 = vpack.c.b16 %v243, %v241
      %v252 = vpack.c.b16 %v244, %v242
      %v253 = vpack.c.b16 %v247, %v245
      %v254 = vpack.c.b16 %v248, %v246
      %v255 = vpack.c.b16 %v249, %v249
      %v256 = vpack.c.b16 %v250, %v250
      %vm261 = vcmask 326656
      %v263 = vsel %vm261, %v230, 0
      %vm265 = vcmask 1043456
      %v267 = vsel %vm265, %v255, 0
      %v270 = vsel %vm265, %v256, 0
      %272 = vmatprep.subr.bf16.mxu0 %v252
      %273 = vmatpush1.bf16.msra.mxu0 %v251
      %274 = vmatprep.subr.bf16.mxu0 %v254
      %275 = vmatpush1.bf16.msra.mxu0 %v253
      %276 = vmatprep.subr.bf16.mxu0 %v270
      %277 = vmatpush1.bf16.msra.mxu0 %v267
      %278 = vmatprep.subr.bf16.mxu0 0
      %279 = vmatpush1.bf16.msra.mxu0 0
      %280 = vmatprep.subr.bf16.mxu0 0
      %281 = vmatpush1.bf16.msra.mxu0 0
      %282 = vmatprep.subr.bf16.mxu0 0
      %283 = vmatpush1.bf16.msra.mxu0 0
      %284 = vmatprep.subr.bf16.mxu0 0
      %285 = vmatpush1.bf16.msra.mxu0 0
      %286 = vmatprep.subr.bf16.mxu0 0
      %287 = vmatpush1.bf16.msra.mxu0 0
      %288 = vmatprep.subr.bf16.mxu0 0
      %289 = vmatpush1.bf16.msra.mxu0 0
      %290 = vmatprep.subr.bf16.mxu0 0
      %291 = vmatpush1.bf16.msra.mxu0 0
      %292 = vmatprep.subr.bf16.mxu0 0
      %293 = vmatpush1.bf16.msra.mxu0 0
      %294 = vmatprep.subr.bf16.mxu0 0
      %295 = vmatpush1.bf16.msra.mxu0 0
      %296 = vmatprep.subr.bf16.mxu0 0
      %297 = vmatpush1.bf16.msra.mxu0 0
      %298 = vmatprep.subr.bf16.mxu0 0
      %299 = vmatpush1.bf16.msra.mxu0 0
      %300 = vmatprep.subr.bf16.mxu0 0
      %301 = vmatpush1.bf16.msra.mxu0 0
      %302 = vmatprep.subr.bf16.mxu0 0
      %303 = vmatpush1.bf16.msra.mxu0 0
      %304 = vmatprep.mubr.bf16.mxu0 0
      %305 = vmatmul.mubr.bf16.gmra.mrb[0].mxu0 %v263
      %v306 = vpop.f32.mrb[0].mxu0
      %v307 = vadd.f32 0.0, %v306
      %v308 = vpop.f32.mrb[0].mxu0
      %v309 = vadd.f32 0.0, %v308
      %v310 = vpop.f32.mrb[0].mxu0
      %v311 = vpop.f32.mrb[0].mxu0
      %312 = vdwg.mxu0
      %v313 = vpack.c.bf16 %v307, %v307
      %v314 = vpack.c.bf16 %v309, %v309
      %v317 = vunpack.c.l.b16 %v313
      %v318 = vunpack.c.l.b16 %v314
      %v319 = vpack.c.b16 %v318, %v317
      %321 = vst [vmem:[%s220] sm:$0xff] %v319
      %v322 = vadd.f32 %v307, %v309
      %323 = vadd.xlane.f32.xlu0 %v322
      %v324 = vpop.xlane.xlu0 %323
      %v325 = vmul.f32 %v307, %v307
      %v326 = vmul.f32 %v309, %v309
      %v327 = vadd.f32 %v325, %v326
      %328 = vadd.xlane.f32.xlu0 %v327
      %v329 = vpop.xlane.xlu0 %328
      %v330 = vlaneseq
      %v331 = vshrl.u32 %v330, 7
      %vm332 = vcmp.eq.s32.totalorder %v331, 0
      %vm333 = vcmp.eq.s32.totalorder %v331, 1
      %v335 = vlaneseq
      %v336 = vand.u32 %v335, 127
      %v337 = vlaneseq
      %v338 = vshrl.u32 %v337, 7
      %v339 = vsub.s32 %v336, %v338
      %v340 = vrot.slane %v329, %v339
      %vm341 = vcmask 1042434
      %v342 = vsel %vm341, %v340, %v340
      %vm343 = vcmask 1043459
      %v344 = vsel %vm343, %v340, %v342
      %vm345 = vcmask 1044484
      %v346 = vsel %vm345, %v340, %v344
      %vm347 = vcmask 1045509
      %v348 = vsel %vm347, %v340, %v346
      %vm349 = vcmask 1046534
      %v350 = vsel %vm349, %v340, %v348
      %vm351 = vcmask 1047559
      %v352 = vsel %vm351, %v340, %v350
      %v354 = vsel %vm333, %v352, 0.0
      %v356 = vlaneseq
      %v357 = vshrl.u32 %v356, 7
      %v358 = vsub.s32 %v336, %v357
      %v359 = vrot.slane %v324, %v358
      %v360 = vsel %vm341, %v359, %v359
      %v361 = vsel %vm343, %v359, %v360
      %v362 = vsel %vm345, %v359, %v361
      %v363 = vsel %vm347, %v359, %v362
      %v364 = vsel %vm349, %v359, %v363
      %v365 = vsel %vm351, %v359, %v364
      %v367 = vsel %vm332, %v365, %v354
      %vm368 = vcmask 64512
      %369 = vst.msk [vmem:[%s228] sm:$0xff] %vm368, %v367
      %s370 = smul.u32 2, %s20
      %p371 = scmp.lt.s32.totalorder %s19, 1
      %s372 = scalar_select %p371, %s19, 1
      %p373 = scmp.lt.s32.totalorder %s370, 1
      %s374 = scalar_select %p373, %s370, 1
      %s375 = smul.addr %s372, 2
      %s376 = sadd.s32 %s374, %s375
      %s377 = smul.addr %s376, 4
      %s378 = scalar_lea.vmem %s2, %s377
      %p379 = scmp.lt.s32.totalorder %s19, 1
      %s380 = scalar_select %p379, %s19, 1
      %p381 = scmp.lt.s32.totalorder %s20, 0
      %s382 = scalar_select %p381, %s20, 0
      %s383 = sadd.s32 %s382, %s380
      %s384 = smul.addr %s383, 8
      %s385 = scalar_lea.vmem %s3, %s384
      // Predicated region
      $region29: #{conv_forward.2} parent=27 // pred_check
        %p386 = pneg %p96
      $region30: #{conv_forward.2} parent=27 // pred_check_branch
        %388 = sbr.rel (%p386) target = $region32
      $region31: #{conv_forward.2} parent=27 // pred_region
        %s389 = smul.u32 2, %s20
      $region32: #{conv_forward.2} parent=27 // pred_fallthru
        _
      // Predicated region
      $region33: #{conv_forward.2} parent=27 // pred_check
        %p390 = pneg %p124
      $region34: #{conv_forward.2} parent=27 // pred_check_branch
        %392 = sbr.rel (%p390) target = $region36
      $region35: #{conv_forward.2} parent=27 // pred_region
        _
      $region36: #{conv_forward.2} parent=27 // pred_fallthru
        _
    $region28: #{conv_forward.2} parent=5 // pred_fallthru
      _
    %p393 = scmp.le.s32.totalorder 2, %s10
    // Predicated region
    $region37: #{conv_forward.2} parent=5 // pred_check
      %p394 = pneg %p393
    $region38: #{conv_forward.2} parent=5 // pred_check_branch
      %396 = sbr.rel (%p394) target = $region40
    $region39: #{conv_forward.2} parent=5 // pred_region
      %s397 = ssub.s32 %s10, 2
      // Predicated region
      $region41: #{conv_forward.2} parent=39 // pred_check
        %p398 = pneg %p102
      $region42: #{conv_forward.2} parent=39 // pred_check_branch
        %400 = sbr.rel (%p398) target = $region44
      $region43: #{conv_forward.2} parent=39 // pred_region
        %s401 = smul.u32 2, %s22
        %p402 = scmp.lt.s32.totalorder %s21, 1
        %s403 = scalar_select %p402, %s21, 1
        %p404 = scmp.lt.s32.totalorder %s401, 1
        %s405 = scalar_select %p404, %s401, 1
        %s406 = smul.addr %s403, 2
        %s407 = sadd.s32 %s405, %s406
        %s408 = smul.addr %s407, 4
        %s409 = scalar_lea.vmem %s2, %s408
      $region44: #{conv_forward.2} parent=39 // pred_fallthru
        _
      // Predicated region
      $region45: #{conv_forward.2} parent=39 // pred_check
        %p410 = pneg %p130
      $region46: #{conv_forward.2} parent=39 // pred_check_branch
        %412 = sbr.rel (%p410) target = $region48
      $region47: #{conv_forward.2} parent=39 // pred_region
        %p413 = scmp.lt.s32.totalorder %s21, 1
        %s414 = scalar_select %p413, %s21, 1
        %p415 = scmp.lt.s32.totalorder %s22, 0
        %s416 = scalar_select %p415, %s22, 0
        %s417 = sadd.s32 %s416, %s414
        %s418 = smul.addr %s417, 8
        %s419 = scalar_lea.vmem %s3, %s418
      $region48: #{conv_forward.2} parent=39 // pred_fallthru
        _
    $region40: #{conv_forward.2} parent=5 // pred_fallthru
      _
  $region6: #{conv_forward.2} parent=0 // loop_footer
    %s14 = sadd.s32 1, %s10
  $region7: #{conv_forward.2} parent=0 // loop_footer_branch
    %9 = sbr.rel target = $region3
  $region8: #{conv_forward.2} parent=0 // loop_exit
    _

</llo_original>
